<compile_context>
chip_gen: v5e
topology: v5e:2x2
jax: 0.10.0
libtpu: 0.0.40
codegen_flags: <defaults>
</compile_context>

<pallas_src>
import functools
import math

import jax
import jax.numpy as jnp
import numpy as np
from jax.experimental import pallas as pl
from jax.experimental.pallas import tpu as pltpu


def _round_up(x, m):
    return ((x + m - 1) // m) * m


def _sublane(dtype):
    return {4: 8, 2: 16, 1: 32}.get(jnp.dtype(dtype).itemsize, 8)


def _pick_tile(dim, candidates, align, max_waste_frac=0.25):
    """Largest candidate tile whose padding waste stays under max_waste_frac."""
    for t in candidates:
        if t < align:
            continue
        padded = _round_up(max(dim, 1), t)
        if (padded - dim) / padded <= max_waste_frac:
            return t
    return align


def _vmem_budget_bytes():
    """~75% of per-core VMEM: ~96 MiB on v5e/v6e, ~48 MiB on v7x.
    Falls back to the v7x-safe value if the query is unavailable."""
    try:
        cap = getattr(pltpu.get_tpu_info(), "vmem_capacity_bytes", None)
    except Exception:
        cap = None
    if not cap:
        cap = 64 * 1024 * 1024
    return int(cap) * 3 // 4


# ----------------------------------------------------------------------------
# Kernels
# ----------------------------------------------------------------------------
def _mlp_resident_kernel(x_ref, w_ref, b_ref, o_ref, *, negative_slope):
    # x_ref: (tm, Kp)   w_ref: (Kp, Np) VMEM-resident   b_ref: (1, Np)
    z = jnp.dot(x_ref[...], w_ref[...], preferred_element_type=jnp.float32)
    z = z + b_ref[...].astype(jnp.float32)
    o_ref[...] = jnp.maximum(z, negative_slope * z).astype(o_ref.dtype)


def _mlp_kreduce_kernel(x_ref, w_ref, b_ref, o_ref, acc_ref, *, negative_slope):
    # x_ref: (tm, tk)   w_ref: (tk, tn)   b_ref: (1, tn)   acc_ref: (tm, tn) f32
    k = pl.program_id(2)

    @pl.when(k == 0)
    def _():
        # Init accumulator with the broadcast bias: saves the epilogue add.
        acc_ref[...] = jnp.zeros(acc_ref.shape, jnp.float32) + b_ref[...].astype(jnp.float32)

    acc_ref[...] += jnp.dot(x_ref[...], w_ref[...],
                            preferred_element_type=jnp.float32)

    @pl.when(k == pl.num_programs(2) - 1)
    def _():
        z = acc_ref[...]
        o_ref[...] = jnp.maximum(z, negative_slope * z).astype(o_ref.dtype)


# ----------------------------------------------------------------------------
# Wrapper
# ----------------------------------------------------------------------------
def mlp_pallas(x, weight, bias, negative_slope=0.1, matmul_dtype=None,
               force_kreduce=False):
    """Fused Dropout(p=0) -> Linear -> LeakyReLU(negative_slope).

    x: (..., n_in)  weight: (n_out, n_in)  bias: (n_out,)
    matmul_dtype: optional MXU operand dtype (e.g. jnp.bfloat16); accumulation
      stays in f32 and the result is returned in x.dtype.
    """
    # TODO(synk): Dropout is the identity here (module default p=0 / eval);
    # p>0 training would need a pltpu.prng_* Bernoulli mask.
    lead = x.shape[:-1]
    K = x.shape[-1]
    N, K_w = weight.shape
    assert K_w == K, "weight must be (n_out, n_in)"
    M = int(np.prod(lead)) if lead else 1
    out_dtype = x.dtype
    mm_dtype = jnp.dtype(matmul_dtype) if matmul_dtype is not None else jnp.dtype(x.dtype)
    mm_item = mm_dtype.itemsize
    out_item = jnp.dtype(out_dtype).itemsize
    m_align = _sublane(mm_dtype)

    # Lane / contraction alignment: K and N to multiples of 128, M to sublane.
    Kp = _round_up(K, 128)
    Np = _round_up(N, 128)

    x2 = x.reshape(M, K).astype(mm_dtype)
    # One-time weight transpose -> (K, N): canonical MXU layout, no in-kernel
    # transpose.  Callers reusing the same weights can hoist/jit this prep so
    # it is not repeated per step.
    w_t = weight.T.astype(mm_dtype)
    b2 = bias.astype(jnp.float32).reshape(1, N)

    budget = _vmem_budget_bytes()

    # ---- plan selection -----------------------------------------------------
    m_candidates = (512, 256, 128, 64, 32, 16, 8)
    tm = _pick_tile(M, m_candidates, m_align)

    w_vmem_bytes = Kp * Np * mm_item

    def resident_fits(tm_):
        total = (2 * tm_ * Kp * mm_item      # x tile, double-buffered
                 + 2 * w_vmem_bytes          # W (counted at 2 buffers, conservative)
                 + 2 * tm_ * Np * out_item   # out tile, double-buffered
                 + 2 * Np * 4)               # bias
        return total <= budget and 2 * w_vmem_bytes <= budget * 2 // 3

    use_resident = (not force_kreduce) and resident_fits(tm)
    if (not force_kreduce) and (not use_resident):
        for t in m_candidates:              # smaller M tile may still fit W
            if m_align <= t < tm and resident_fits(t):
                tm, use_resident = t, True
                break

    if use_resident:
        # v7x has 2 TensorCores: prefer >= 2 M tiles (parallel axis) when
        # there is enough work, so neither core sits idle.
        if M >= 2 * m_align and _round_up(M, tm) // tm < 2:
            for t in m_candidates:
                if m_align <= t <= tm:
                    padded = _round_up(M, t)
                    if (padded // t >= 2 and (padded - M) / padded <= 0.25
                            and resident_fits(t)):
                        tm = t
                        break
        tn, tk = Np, Kp
    else:
        tn = _pick_tile(N, (512, 256, 128), 128)
        tk = Kp if Kp <= 1024 else _pick_tile(K, (1024, 512, 256, 128), 128)

        def kreduce_bytes(tm_, tn_, tk_):
            return (2 * (tm_ * tk_ + tk_ * tn_) * mm_item  # x/w tiles, double-buffered
                    + 2 * tm_ * tn_ * out_item             # out tile, double-buffered
                    + tm_ * tn_ * 4                        # f32 accumulator
                    + 2 * tn_ * 4)                         # bias

        while kreduce_bytes(tm, tn, tk) > budget and tk > 128:
            tk = max(128, _round_up(tk // 2, 128))
        while kreduce_bytes(tm, tn, tk) > budget and tn > 128:
            tn = max(128, tn // 2)
        while kreduce_bytes(tm, tn, tk) > budget and tm > m_align:
            tm = max(m_align, _round_up(tm // 2, m_align))

    Mp = _round_up(M, tm)
    Npad = _round_up(N, tn)
    Kpad = _round_up(K, tk)

    # ---- padding (skipped entirely when already aligned) ---------------------
    x_p = x2 if (Mp == M and Kpad == K) else jnp.pad(x2, ((0, Mp - M), (0, Kpad - K)))
    w_p = w_t if (Kpad == K and Npad == N) else jnp.pad(w_t, ((0, Kpad - K), (0, Npad - N)))
    b_p = b2 if Npad == N else jnp.pad(b2, ((0, 0), (0, Npad - N)))

    # ---- cost estimate (advisory) --------------------------------------------
    if use_resident:
        bytes_accessed = (mm_item * (Mp * Kpad + Kpad * Npad)
                          + 4 * Npad + out_item * Mp * Npad)
    else:
        n_i, n_j = Mp // tm, Npad // tn
        bytes_accessed = (mm_item * (Mp * Kpad * n_j + Kpad * Npad * n_i)
                          + 4 * Npad * n_i + out_item * Mp * Npad)
    cost = pl.CostEstimate(flops=2 * Mp * Npad * Kpad, transcendentals=0,
                           bytes_accessed=int(bytes_accessed))

    # ---- pallas_call ----------------------------------------------------------
    if use_resident:
        kernel = functools.partial(_mlp_resident_kernel,
                                   negative_slope=negative_slope)
        out_p = pl.pallas_call(
            kernel,
            out_shape=jax.ShapeDtypeStruct((Mp, Npad), out_dtype),
            grid_spec=pltpu.PrefetchScalarGridSpec(
                num_scalar_prefetch=0,
                grid=(Mp // tm,),
                in_specs=[
                    pl.BlockSpec((tm, Kpad), lambda i: (i, 0)),
                    pl.BlockSpec((Kpad, Npad), lambda i: (0, 0)),   # VMEM-resident W
                    pl.BlockSpec((1, Npad), lambda i: (0, 0)),
                ],
                out_specs=pl.BlockSpec((tm, Npad), lambda i: (i, 0)),
            ),
            compiler_params=pltpu.CompilerParams(
                dimension_semantics=("parallel",),
                vmem_limit_bytes=budget,
            ),
            cost_estimate=cost,
        )(x_p, w_p, b_p)
    else:
        kernel = functools.partial(_mlp_kreduce_kernel,
                                   negative_slope=negative_slope)
        out_p = pl.pallas_call(
            kernel,
            out_shape=jax.ShapeDtypeStruct((Mp, Npad), out_dtype),
            grid_spec=pltpu.PrefetchScalarGridSpec(
                num_scalar_prefetch=0,
                grid=(Mp // tm, Npad // tn, Kpad // tk),
                in_specs=[
                    pl.BlockSpec((tm, tk), lambda i, j, k: (i, k)),
                    pl.BlockSpec((tk, tn), lambda i, j, k: (k, j)),
                    pl.BlockSpec((1, tn), lambda i, j, k: (0, j)),
                ],
                out_specs=pl.BlockSpec((tm, tn), lambda i, j, k: (i, j)),
                scratch_shapes=[pltpu.VMEM((tm, tn), jnp.float32)],
            ),
            compiler_params=pltpu.CompilerParams(
                dimension_semantics=("parallel", "parallel", "arbitrary"),
                vmem_limit_bytes=budget,
            ),
            cost_estimate=cost,
        )(x_p, w_p, b_p)

    return out_p[:M, :N].reshape(*lead, N)


def make_linear_params(key, n_in, n_out):
    """torch nn.Linear default init: U(-1/sqrt(n_in), 1/sqrt(n_in))."""
    kw, kb = jax.random.split(key)
    bound = 1.0 / math.sqrt(n_in)
    w = jax.random.uniform(kw, (n_out, n_in), jnp.float32, -bound, bound)
    b = jax.random.uniform(kb, (n_out,), jnp.float32, -bound, bound)
    return w, b


if __name__ == "__main__":
    B, S, n_in, n_out = 2, 8, 32, 64
    key = jax.random.PRNGKey(0)
    kx, kp = jax.random.split(key)

    x = jax.random.normal(kx, (B, S, n_in), dtype=jnp.float32)
    w, b = make_linear_params(kp, n_in, n_out)

    # Reference: dropout(p=0) -> linear -> leaky_relu(0.1), same as the module.
    z = jnp.einsum("bsi,oi->bso", x, w) + b
    ref = np.asarray(jnp.where(z > 0, z, 0.1 * z))

    # 1) f32, VMEM-resident-weight plan (default for these shapes).
    out = jax.block_until_ready(mlp_pallas(x, w, b, negative_slope=0.1))
    assert out.shape == (B, S, n_out)
    np.testing.assert_allclose(np.asarray(out), ref, rtol=1e-5, atol=1e-5)

    # 2) K-reduction grid plan (forced), same math, tight tolerance.
    out_kr = jax.block_until_ready(
        mlp_pallas(x, w, b, negative_slope=0.1, force_kreduce=True))
    np.testing.assert_allclose(np.asarray(out_kr), ref, rtol=1e-5, atol=1e-5)

    # 3) bf16 matmul operands with f32 accumulation (looser tolerance).
    out_bf = jax.block_until_ready(
        mlp_pallas(x, w, b, negative_slope=0.1, matmul_dtype=jnp.bfloat16))
    np.testing.assert_allclose(np.asarray(out_bf), ref, rtol=2e-2, atol=2e-2)

    print("KERNEL_OK")
</pallas_src>

<mosaic_0001>
module attributes {stable_mosaic.version = 11 : i64} {
  func.func @_mlp_resident_kernel(%arg0: i32, %arg1: memref<8x128xf32, #tpu.memory_space<vmem>>, %arg2: memref<128x128xf32, #tpu.memory_space<vmem>>, %arg3: memref<1x128xf32, #tpu.memory_space<vmem>>, %arg4: memref<8x128xf32, #tpu.memory_space<vmem>>) attributes {dimension_semantics = [#tpu.dimension_semantics<parallel>], iteration_bounds = array<i64: 2>, scalar_prefetch = 0 : i64, scratch_operands = 0 : i64, tpu.core_type = #tpu.core_type<tc>, window_params = [{transform_indices = @transform_0, window_bounds = array<i64: 8, 128>}, {pipeline_mode = #tpu.pipeline_mode<synchronous>, transform_indices = @transform_1, window_bounds = array<i64: 128, 128>}, {pipeline_mode = #tpu.pipeline_mode<synchronous>, transform_indices = @transform_2, window_bounds = array<i64: 1, 128>}, {transform_indices = @transform_3, window_bounds = array<i64: 8, 128>}]} {
    %c0 = arith.constant 0 : index
    %c0_0 = arith.constant 0 : index
    %0 = vector.load %arg1[%c0, %c0_0] : memref<8x128xf32, #tpu.memory_space<vmem>>, vector<8x128xf32>
    %c0_1 = arith.constant 0 : index
    %c0_2 = arith.constant 0 : index
    %1 = vector.load %arg2[%c0_1, %c0_2] : memref<128x128xf32, #tpu.memory_space<vmem>>, vector<128x128xf32>
    %cst = arith.constant dense<0.000000e+00> : vector<8x128xf32>
    %2 = tpu.matmul %0, %1, %cst {dimension_numbers = #tpu.dot_dimension_numbers<[1], [0], [0], [1], [0, 0, 1, 1], [], []>} : vector<8x128xf32>, vector<128x128xf32>, vector<8x128xf32> -> vector<8x128xf32>
    %c0_3 = arith.constant 0 : index
    %c0_4 = arith.constant 0 : index
    %3 = vector.load %arg3[%c0_3, %c0_4] : memref<1x128xf32, #tpu.memory_space<vmem>>, vector<1x128xf32>
    %4 = vector.broadcast %3 : vector<1x128xf32> to vector<8x128xf32>
    %5 = arith.addf %2, %4 : vector<8x128xf32>
    %cst_5 = arith.constant 1.000000e-01 : f32
    %6 = vector.broadcast %cst_5 : f32 to vector<8x128xf32>
    %7 = arith.mulf %6, %5 : vector<8x128xf32>
    %8 = arith.maximumf %5, %7 : vector<8x128xf32>
    %c0_6 = arith.constant 0 : index
    %c0_7 = arith.constant 0 : index
    %9 = vector.load %arg4[%c0_6, %c0_7] : memref<8x128xf32, #tpu.memory_space<vmem>>, vector<8x128xf32>
    tpu.vector_store %arg4[%c0_6, %c0_7], %8 {strides = array<i32>} : memref<8x128xf32, #tpu.memory_space<vmem>>, vector<8x128xf32>,
    return
  }
  func.func @transform_0(%arg0: i32) -> (i32, i32) {
    %c0_i32 = arith.constant 0 : i32
    %c0_i32_0 = arith.constant 0 : i32
    return %arg0, %c0_i32 : i32, i32
  }
  func.func @transform_1(%arg0: i32) -> (i32, i32) {
    %c0_i32 = arith.constant 0 : i32
    %c0_i32_0 = arith.constant 0 : i32
    %c0_i32_1 = arith.constant 0 : i32
    return %c0_i32, %c0_i32_0 : i32, i32
  }
  func.func @transform_2(%arg0: i32) -> (i32, i32) {
    %c0_i32 = arith.constant 0 : i32
    %c0_i32_0 = arith.constant 0 : i32
    %c0_i32_1 = arith.constant 0 : i32
    return %c0_i32, %c0_i32_0 : i32, i32
  }
  func.func @transform_3(%arg0: i32) -> (i32, i32) {
    %c0_i32 = arith.constant 0 : i32
    %c0_i32_0 = arith.constant 0 : i32
    return %arg0, %c0_i32 : i32, i32
  }
}

</mosaic_0001>

<llo_original>
// kernel: tpu_custom_call.1
$region0: #{tpu_custom_call.1}
  #allocation0 [shape = 'u32[]', space=smem, size = 0x4, offset = 0x4, fixed_abs, tag = 'smem constant byte address 0x4 - core index']
  #allocation1 [shape = 'u32[72,128]{1,0:T(1,128)}', space=vmem, size = 0x9000, scoped, tag = 'internal scratch']
  %s0 = inlined_call_operand.hbm [shape: f32[16,128], index: 0, kind: input, shape index: {}]
  %s1 = inlined_call_operand.hbm [shape: f32[128,128], index: 1, kind: input, shape index: {}]
  %s2 = inlined_call_operand.vmem [shape: f32[1,128], index: 2, kind: input, shape index: {}]
  %s3 = inlined_call_operand.hbm [shape: f32[16,128], index: 3, kind: output, shape index: {}]
  %s4 = sld [smem:[#allocation0]]
  $region53: #{tpu_custom_call.1} parent=0
    _
  %s6 = ssub.s32 1, %s4
  %s7 = scalar_select 0, %s6, %s4
  $region1: #{tpu_custom_call.1} parent=0
    #allocation2 [shape = 'u8[8192]{0}', space=vmem, size = 0x2000, scoped, tag = 'input window, operand 0']
    #allocation3 [shape = 's32[2]{0}', space=sflag, size = 0x8, scoped, tag = 'scoped memory for tpu_custom_call.1']
    #allocation4 [shape = 's32[2]{0}', space=sflag, size = 0x8, scoped, tag = 'scoped memory for tpu_custom_call.1']
    #allocation5 [shape = 'u8[65536]{0}', space=vmem, size = 0x10000, scoped, tag = 'input window, operand 1, single buffered']
    #allocation6 [shape = 's32[1]{0}', space=sflag, size = 0x4, scoped, tag = 'scoped memory for tpu_custom_call.1']
    #allocation7 [shape = 'u8[8192]{0}', space=vmem, size = 0x2000, scoped, tag = 'output window, operand 0']
    %8 = vsyncpa [#allocation3], 0
    %s9 = scalar_lea.sflag [#allocation3], 1
    %10 = vsyncpa %s9, 0
    %11 = vsyncpa [#allocation6], 0
    %12 = vsyncpa [#allocation4], 0
    %s13 = scalar_lea.sflag [#allocation4], 1
    %14 = vsyncpa %s13, 0
    loop: start=0, step=1, limit=4
    $region2: #{tpu_custom_call.1} parent=1 // loop_pre_header
      _
    $region3: #{tpu_custom_call.1} parent=1 // loop_header
      %s16 = sphi 0, %s20
      %p17 = scmp.ge.s32.totalorder %s16, 4
      %s26 = sphi 0, %s28
      %s29 = sphi 0, %s26
      %s30 = sphi 0, %s29
      %s46 = sphi 0, %s30
      %s50 = sphi 0, %s50
      %s52 = sphi 0, %s50
      %s53 = sphi 0, %s52
      %s67 = sphi 0, %s53
      %s71 = sphi 0, %s71
      %s73 = sphi 0, %s71
      %s74 = sphi 0, %s73
      %s88 = sphi 0, %s74
      %s94 = sphi 0, %s96
      %s97 = sphi 0, %s94
      %s98 = sphi 0, %s97
      %s114 = sphi 0, %s98
    $region4: #{tpu_custom_call.1} parent=1 // loop_header_branch
      %19 = sbr.rel (%p17) target = $region8
    $region5: #{tpu_custom_call.1} parent=1 // loop_body
      %s21 = ssub.s32 %s16, 1
      %s22 = ssub.s32 %s16, 2
      %s23 = sadd.s32 %s16, 1
      %s24 = ssub.s32 %s16, %s23
      %p25 = scmp.eq.s32.totalorder %s24, 0
      %s27 = sadd.s32 %s26, 1
      %s28 = scalar_select %p25, %s26, %s27
      %p31 = pneg %p25
      %p32 = scmp.eq.s32.totalorder %s16, 1
      %p33 = por %p31, %p32
      %p34 = scmp.ne.s32.totalorder %s26, %s29
      %p35 = scmp.eq.s32.totalorder %s16, 0
      %p36 = por %p34, %p35
      %p37 = scmp.ne.s32.totalorder %s26, %s29
      %p38 = scmp.eq.s32.totalorder %s21, 1
      %p39 = por %p37, %p38
      %p40 = scmp.ne.s32.totalorder %s29, %s30
      %p41 = scmp.eq.s32.totalorder %s21, 0
      %p42 = por %p40, %p41
      %p43 = scmp.ne.s32.totalorder %s29, %s30
      %p44 = scmp.eq.s32.totalorder %s22, 1
      %p45 = por %p43, %p44
      %p47 = scmp.ne.s32.totalorder %s30, %s46
      %p48 = scmp.eq.s32.totalorder %s22, 0
      %p49 = por %p47, %p48
      %s51 = sadd.s32 %s50, 1
      %p54 = scmp.eq.s32.totalorder %s16, 1
      %p55 = scmp.ne.s32.totalorder %s50, %s52
      %p56 = scmp.eq.s32.totalorder %s16, 0
      %p57 = por %p55, %p56
      %p58 = scmp.ne.s32.totalorder %s50, %s52
      %p59 = scmp.eq.s32.totalorder %s21, 1
      %p60 = por %p58, %p59
      %p61 = scmp.ne.s32.totalorder %s52, %s53
      %p62 = scmp.eq.s32.totalorder %s21, 0
      %p63 = por %p61, %p62
      %p64 = scmp.ne.s32.totalorder %s52, %s53
      %p65 = scmp.eq.s32.totalorder %s22, 1
      %p66 = por %p64, %p65
      %p68 = scmp.ne.s32.totalorder %s53, %s67
      %p69 = scmp.eq.s32.totalorder %s22, 0
      %p70 = por %p68, %p69
      %s72 = sadd.s32 %s71, 1
      %p75 = scmp.eq.s32.totalorder %s16, 1
      %p76 = scmp.ne.s32.totalorder %s71, %s73
      %p77 = scmp.eq.s32.totalorder %s16, 0
      %p78 = por %p76, %p77
      %p79 = scmp.ne.s32.totalorder %s71, %s73
      %p80 = scmp.eq.s32.totalorder %s21, 1
      %p81 = por %p79, %p80
      %p82 = scmp.ne.s32.totalorder %s73, %s74
      %p83 = scmp.eq.s32.totalorder %s21, 0
      %p84 = por %p82, %p83
      %p85 = scmp.ne.s32.totalorder %s73, %s74
      %p86 = scmp.eq.s32.totalorder %s22, 1
      %p87 = por %p85, %p86
      %p89 = scmp.ne.s32.totalorder %s74, %s88
      %p90 = scmp.eq.s32.totalorder %s22, 0
      %p91 = por %p89, %p90
      %s92 = ssub.s32 %s16, %s23
      %p93 = scmp.eq.s32.totalorder %s92, 0
      %s95 = sadd.s32 %s94, 1
      %s96 = scalar_select %p93, %s94, %s95
      %p99 = pneg %p93
      %p100 = scmp.eq.s32.totalorder %s16, 1
      %p101 = por %p99, %p100
      %p102 = scmp.ne.s32.totalorder %s94, %s97
      %p103 = scmp.eq.s32.totalorder %s16, 0
      %p104 = por %p102, %p103
      %p105 = scmp.ne.s32.totalorder %s94, %s97
      %p106 = scmp.eq.s32.totalorder %s21, 1
      %p107 = por %p105, %p106
      %p108 = scmp.ne.s32.totalorder %s97, %s98
      %p109 = scmp.eq.s32.totalorder %s21, 0
      %p110 = por %p108, %p109
      %p111 = scmp.ne.s32.totalorder %s97, %s98
      %p112 = scmp.eq.s32.totalorder %s22, 1
      %p113 = por %p111, %p112
      %p115 = scmp.ne.s32.totalorder %s98, %s114
      %p116 = scmp.eq.s32.totalorder %s22, 0
      %p117 = por %p115, %p116
      %p118 = scmp.le.s32.totalorder 1, %s16
      %p119 = scmp.lt.s32.totalorder %s16, 3
      %p120 = pnand %p118, %p119
      %p121 = pneg %p120
      // Predicated region
      $region9: #{tpu_custom_call.1} parent=5 // pred_check
        _
      $region10: #{tpu_custom_call.1} parent=5 // pred_check_branch
        %123 = sbr.rel (%p120) target = $region12
      $region11: #{tpu_custom_call.1} parent=5 // pred_region
        %s124 = ssub.s32 %s16, 1
        // Predicated region
        $region13: #{tpu_custom_call.1} parent=11 // pred_check
          %p125 = pneg %p63
        $region14: #{tpu_custom_call.1} parent=11 // pred_check_branch
          %127 = sbr.rel (%p125) target = $region16
        $region15: #{tpu_custom_call.1} parent=11 // pred_region
          %129 = vsyncadd [#allocation6], 0
          %s130 = sshll.u32 %s1, 4
          %s131 = int_to_ptr.hbm [resolvable:$true] %s130
          %s132 = sshll.u32 [#allocation5], 4
          %s133 = int_to_ptr.vmem [resolvable:$true] %s132
          %138 = dma.hbm_to_vmem [thread:$0]  %s131, 2048, %s133, [#allocation6], 128, 128, 8
        $region16: #{tpu_custom_call.1} parent=11 // pred_fallthru
          _
        // Predicated region
        $region17: #{tpu_custom_call.1} parent=11 // pred_check
          %p139 = pneg %p84
        $region18: #{tpu_custom_call.1} parent=11 // pred_check_branch
          %141 = sbr.rel (%p139) target = $region20
        $region19: #{tpu_custom_call.1} parent=11 // pred_region
          _
        $region20: #{tpu_custom_call.1} parent=11 // pred_fallthru
          _
      $region12: #{tpu_custom_call.1} parent=5 // pred_fallthru
        _
      %p142 = scmp.lt.s32.totalorder %s16, 2
      // Predicated region
      $region21: #{tpu_custom_call.1} parent=5 // pred_check
        %p143 = pneg %p142
      $region22: #{tpu_custom_call.1} parent=5 // pred_check_branch
        %145 = sbr.rel (%p143) target = $region24
      $region23: #{tpu_custom_call.1} parent=5 // pred_region
        // Predicated region
        $region25: #{tpu_custom_call.1} parent=23 // pred_check
          %p146 = pneg %p36
        $region26: #{tpu_custom_call.1} parent=23 // pred_check_branch
          %148 = sbr.rel (%p146) target = $region28
        $region27: #{tpu_custom_call.1} parent=23 // pred_region
          %s149 = sand.u32 %s26, 1
          %s150 = scalar_lea.sflag [#allocation3], %s149
          %s151 = sand.u32 %s26, 1
          %s152 = smul.addr %s151, 8
          %s153 = scalar_lea.vmem [#allocation2], %s152
          %155 = vsyncadd %s150, 0
          %s156 = smul.addr %s16, 8
          %s157 = scalar_lea.hbm %s0, %s156
          %s159 = sshll.u32 %s157, 4
          %s160 = int_to_ptr.hbm [resolvable:$true] %s159
          %s161 = sshll.u32 %s153, 4
          %s162 = int_to_ptr.vmem [resolvable:$true] %s161
          %164 = dma.hbm_to_vmem [thread:$0]  %s160, 128, %s162, %s150
        $region28: #{tpu_custom_call.1} parent=23 // pred_fallthru
          _
      $region24: #{tpu_custom_call.1} parent=5 // pred_fallthru
        _
      %p165 = scmp.le.s32.totalorder 1, %s16
      %p166 = scmp.lt.s32.totalorder %s16, 3
      %p167 = pnand %p165, %p166
      %p168 = pneg %p167
      // Predicated region
      $region29: #{tpu_custom_call.1} parent=5 // pred_check
        _
      $region30: #{tpu_custom_call.1} parent=5 // pred_check_branch
        %170 = sbr.rel (%p167) target = $region32
      $region31: #{tpu_custom_call.1} parent=5 // pred_region
        %s171 = ssub.s32 %s16, 1
        %s172 = sand.u32 %s29, 1
        %s173 = scalar_lea.sflag [#allocation3], %s172
        %s174 = sand.u32 %s29, 1
        %s175 = smul.addr %s174, 8
        %s176 = scalar_lea.vmem [#allocation2], %s175
        // Predicated region
        $region33: #{tpu_custom_call.1} parent=31 // pred_check
          %p177 = pneg %p42
        $region34: #{tpu_custom_call.1} parent=31 // pred_check_branch
          %179 = sbr.rel (%p177) target = $region36
        $region35: #{tpu_custom_call.1} parent=31 // pred_region
          %181 = dma.done %s173, 128
        $region36: #{tpu_custom_call.1} parent=31 // pred_fallthru
          _
        // Predicated region
        $region37: #{tpu_custom_call.1} parent=31 // pred_check
          %p182 = pneg %p63
        $region38: #{tpu_custom_call.1} parent=31 // pred_check_branch
          %184 = sbr.rel (%p182) target = $region40
        $region39: #{tpu_custom_call.1} parent=31 // pred_region
          %186 = dma.done [#allocation6], 2048
        $region40: #{tpu_custom_call.1} parent=31 // pred_fallthru
          _
        %s187 = sand.u32 %s29, 1
        %s188 = scalar_lea.sflag [#allocation3], %s187
        %s189 = sand.u32 %s29, 1
        %s190 = smul.addr %s189, 8
        %s191 = scalar_lea.vmem [#allocation2], %s190
        %p192 = pneg %p42
        %p193 = pneg %p39
        %p194 = pneg %p63
        %p195 = pneg %p60
        %p196 = pneg %p84
        %p197 = pneg %p81
        %p198 = pneg %p110
        %p199 = pneg %p107
        %s200 = sand.u32 %s97, 1
        %s201 = scalar_lea.sflag [#allocation4], %s200
        %s202 = sand.u32 %s97, 1
        %s203 = smul.addr %s202, 8
        %s204 = scalar_lea.vmem [#allocation7], %s203
        %v205 = vld [vmem:[%s176] sm:$0xff]
        %v206 = vld [vmem:[#allocation5] sm:$0xff]
        %v207 = vld [vmem:[#allocation5 + $0x8] sm:$0xff]
        %v208 = vld [vmem:[#allocation5 + $0x10] sm:$0xff]
        %v209 = vld [vmem:[#allocation5 + $0x18] sm:$0xff]
        %v210 = vld [vmem:[#allocation5 + $0x20] sm:$0xff]
        %v211 = vld [vmem:[#allocation5 + $0x28] sm:$0xff]
        %v212 = vld [vmem:[#allocation5 + $0x30] sm:$0xff]
        %v213 = vld [vmem:[#allocation5 + $0x38] sm:$0xff]
        %v214 = vld [vmem:[#allocation5 + $0x40] sm:$0xff]
        %v215 = vld [vmem:[#allocation5 + $0x48] sm:$0xff]
        %v216 = vld [vmem:[#allocation5 + $0x50] sm:$0xff]
        %v217 = vld [vmem:[#allocation5 + $0x58] sm:$0xff]
        %v218 = vld [vmem:[#allocation5 + $0x60] sm:$0xff]
        %v219 = vld [vmem:[#allocation5 + $0x68] sm:$0xff]
        %v220 = vld [vmem:[#allocation5 + $0x70] sm:$0xff]
        %v221 = vld [vmem:[#allocation5 + $0x78] sm:$0xff]
        %v222 = vld [vmem:[%s2] sm:$0x1]
        %v224 = vperm.slane %v222, 0
        %226 = vmatpush.msra.mxu0 %v221
        %227 = vmatpush.msra.mxu0 %v220
        %228 = vmatpush.msra.mxu0 %v219
        %229 = vmatpush.msra.mxu0 %v218
        %230 = vmatpush.msra.mxu0 %v217
        %231 = vmatpush.msra.mxu0 %v216
        %232 = vmatpush.msra.mxu0 %v215
        %233 = vmatpush.msra.mxu0 %v214
        %234 = vmatpush.msra.mxu0 %v213
        %235 = vmatpush.msra.mxu0 %v212
        %236 = vmatpush.msra.mxu0 %v211
        %237 = vmatpush.msra.mxu0 %v210
        %238 = vmatpush.msra.mxu0 %v209
        %239 = vmatpush.msra.mxu0 %v208
        %240 = vmatpush.msra.mxu0 %v207
        %241 = vmatpush.msra.mxu0 %v206
        %242 = vmatmul.f32.gmra.mxu0 %v205
        %v243 = vpop.f32.mrf.mxu0
        %v244 = vadd.f32 %v224, %v243
        %245 = vdwg.mxu0
        %v246 = vmul.f32 %v244, 0.1
        %v247 = vmax.f32 %v244, %v246
        %248 = vst [vmem:[%s204] sm:$0xff] %v247
        %s249 = sand.u32 %s97, 1
        %s250 = scalar_lea.sflag [#allocation4], %s249
        %s251 = sand.u32 %s97, 1
        %s252 = smul.addr %s251, 8
        %s253 = scalar_lea.vmem [#allocation7], %s252
        // Predicated region
        $region41: #{tpu_custom_call.1} parent=31 // pred_check
          %p254 = pneg %p107
        $region42: #{tpu_custom_call.1} parent=31 // pred_check_branch
          %256 = sbr.rel (%p254) target = $region44
        $region43: #{tpu_custom_call.1} parent=31 // pred_region
          %258 = vsyncadd %s250, 0
          %s259 = smul.addr %s21, 8
          %s260 = scalar_lea.hbm %s3, %s259
          %s262 = sshll.u32 %s253, 4
          %s263 = int_to_ptr.vmem [resolvable:$true] %s262
          %s264 = sshll.u32 %s260, 4
          %s265 = int_to_ptr.hbm [resolvable:$true] %s264
          %267 = dma.vmem_to_hbm [thread:$0]  %s263, 128, %s265, %s250
        $region44: #{tpu_custom_call.1} parent=31 // pred_fallthru
          _
      $region32: #{tpu_custom_call.1} parent=5 // pred_fallthru
        _
      %p268 = scmp.le.s32.totalorder 2, %s16
      // Predicated region
      $region45: #{tpu_custom_call.1} parent=5 // pred_check
        %p269 = pneg %p268
      $region46: #{tpu_custom_call.1} parent=5 // pred_check_branch
        %271 = sbr.rel (%p269) target = $region48
      $region47: #{tpu_custom_call.1} parent=5 // pred_region
        %s272 = ssub.s32 %s16, 2
        // Predicated region
        $region49: #{tpu_custom_call.1} parent=47 // pred_check
          %p273 = pneg %p113
        $region50: #{tpu_custom_call.1} parent=47 // pred_check_branch
          %275 = sbr.rel (%p273) target = $region52
        $region51: #{tpu_custom_call.1} parent=47 // pred_region
          %s276 = sand.u32 %s98, 1
          %s277 = scalar_lea.sflag [#allocation4], %s276
          %s278 = sand.u32 %s98, 1
          %s279 = smul.addr %s278, 8
          %s280 = scalar_lea.vmem [#allocation7], %s279
          %282 = dma.done %s277, 128
        $region52: #{tpu_custom_call.1} parent=47 // pred_fallthru
          _
      $region48: #{tpu_custom_call.1} parent=5 // pred_fallthru
        _
    $region6: #{tpu_custom_call.1} parent=1 // loop_footer
      %s20 = sadd.s32 1, %s16
    $region7: #{tpu_custom_call.1} parent=1 // loop_footer_branch
      %15 = sbr.rel target = $region3
    $region8: #{tpu_custom_call.1} parent=1 // loop_exit
      _
    %283 = vsyncpa [#allocation3], 1
    %s284 = scalar_lea.sflag [#allocation3], 1
    %285 = vsyncpa %s284, 1
    %286 = vsyncpa [#allocation6], 1
    %287 = vsyncpa [#allocation4], 1
    %s288 = scalar_lea.sflag [#allocation4], 1
    %289 = vsyncpa %s288, 1

</llo_original>
